<compile_context>
chip_gen: v7x
topology: tpu7x:2x2x1
jax: 0.10.0
libtpu: 0.0.40
codegen_flags: <defaults>
</compile_context>

<pallas_src>
import functools

import jax
import jax.numpy as jnp
from jax.experimental import pallas as pl
from jax.experimental.pallas import tpu as pltpu


# Below this batch size the single whole-array block (no grid, no pipeline
# overhead) beats any gridded / megacore-sharded variant.
_SINGLE_BLOCK_MAX = 4096
_TARGET_BLOCK_B = 32768           # lanes per tile target (amortize step overhead)
_DEFAULT_VMEM_LIMIT = 32 * 1024 * 1024


def _round_up(x, m):
    return ((x + m - 1) // m) * m


def _structure_map_kernel(chan_ref, mu_head_ref, mu_last_ref, out_ref, *, p_max):
    """chan/mu_head: [N, TB], mu_last: [1, TB], out: [N+1, TB] (batch on lanes)."""
    n = chan_ref.shape[0]

    chan = chan_ref[...].astype(jnp.float32)        # [N, TB]
    mu_head = mu_head_ref[...].astype(jnp.float32)  # [N, TB]
    mu_last = mu_last_ref[...].astype(jnp.float32)  # [1, TB] (sublane-broadcast)

    num = mu_last * chan                            # [N, TB]
    den = chan + mu_head * mu_last                  # [N, TB]
    # Plain f32 divide to match the reference exactly.  DMA-bound kernel, so
    # arithmetic is free filler; pl.reciprocal(approx=True) is not needed.
    vals = jnp.minimum(num / (den * den), p_max)    # [N, TB]

    # Two direct full-lane stores instead of a lane-axis concatenate.
    out_ref[:n, :] = vals.astype(out_ref.dtype)
    out_ref[n:n + 1, :] = mu_last.astype(out_ref.dtype)


def _auto_block_b(batch, n, vmem_limit_bytes):
    """Pick a lane-tile size: big enough to amortize per-step overhead, small
    enough to double-buffer inside the VMEM limit, and (when gridded) giving
    at least 2 tiles so v7x megacore can shard the parallel axis."""
    # Worst-case (f32) VMEM bytes per lane column, double-buffered (x2):
    # chan[N] + mu_head[N] + mu_last[1->8 sublanes] + out[N+1], sublane-padded.
    sublanes = 2 * _round_up(n, 8) + _round_up(1, 8) + _round_up(n + 1, 8)
    per_lane = 4 * sublanes * 2
    budget = int(vmem_limit_bytes * 0.75)           # leave scratch headroom
    cap = max(128, (budget // per_lane) // 128 * 128)
    block_b = min(_TARGET_BLOCK_B, cap)
    if batch > block_b or batch > _SINGLE_BLOCK_MAX:
        # Gridded path: ensure >= 2 tiles (v7x megacore) with 128-aligned tiles.
        block_b = min(block_b, max(128, _round_up(-(-batch // 2), 128)))
    return block_b


def structure_map(multiplier, channels, *, num_clients, p_max,
                  block_b=None, vmem_limit_bytes=_DEFAULT_VMEM_LIMIT):
    """Pallas implementation of Structure_Map.forward.

    multiplier: [B, N+1], channels: [B, N] -> out: [B, N+1]
    """
    B, N = channels.shape
    assert N == num_clients
    assert multiplier.shape == (B, N + 1)
    out_dtype = multiplier.dtype

    user_block = block_b is not None
    if not user_block:
        block_b = _auto_block_b(B, N, vmem_limit_bytes)
    assert block_b % 128 == 0 or B <= block_b

    # Layout plumbing: batch -> lane axis (lane-dense loads/stores), and split
    # off the last multiplier column as its own [1, B] input.  NOTE: in a
    # larger program these transposes should fuse / be pushed upstream; each
    # materialized relayout is an extra HBM pass comparable to the kernel.
    chan_t = channels.T                       # [N, B]
    mu_head_t = multiplier[:, :N].T           # [N, B]
    mu_last_t = multiplier[:, N:N + 1].T      # [1, B]

    kernel = functools.partial(_structure_map_kernel, p_max=float(p_max))

    single_block = B <= block_b if user_block else (
        B <= block_b and B <= _SINGLE_BLOCK_MAX)

    if single_block:
        # Small batch: single whole-array block, no grid (whole-array blocks
        # are exempt from (8,128) tiling constraints, no pipeline overhead).
        out_t = pl.pallas_call(
            kernel,
            out_shape=jax.ShapeDtypeStruct((N + 1, B), out_dtype),
        )(chan_t, mu_head_t, mu_last_t)
        return out_t.T

    # Large batch: tile over the lane (batch) axis.  No explicit padding --
    # Pallas clips the ragged last block (garbage lanes read, never written).
    grid = (pl.cdiv(B, block_b),)
    out_t = pl.pallas_call(
        kernel,
        out_shape=jax.ShapeDtypeStruct((N + 1, B), out_dtype),
        grid=grid,
        in_specs=[
            pl.BlockSpec((N, block_b), lambda i: (0, i)),
            pl.BlockSpec((N, block_b), lambda i: (0, i)),
            pl.BlockSpec((1, block_b), lambda i: (0, i)),
        ],
        out_specs=pl.BlockSpec((N + 1, block_b), lambda i: (0, i)),
        compiler_params=pltpu.CompilerParams(
            # Independent batch tiles -> shard across TCs on v7x megacore
            # (grid length is kept >= 2 by _auto_block_b when gridded).
            dimension_semantics=("parallel",),
            # Tied to the block_b derivation above; leaves headroom on v7x's
            # 64 MiB physical VMEM while staying portable to v5e/v6e.
            vmem_limit_bytes=vmem_limit_bytes,
        ),
    )(chan_t, mu_head_t, mu_last_t)
    return out_t.T


def structure_map_ref(multiplier, channels, *, num_clients, p_max):
    """Pure-JAX reference mirroring the PyTorch loop semantics."""
    mu_last = multiplier[:, num_clients:num_clients + 1]
    mu_head = multiplier[:, :num_clients]
    tmp1 = mu_last * channels
    tmp2 = channels + mu_head * mu_last
    head = jnp.minimum(tmp1 / jnp.power(tmp2, 2), p_max)
    return jnp.concatenate([head, mu_last], axis=1)


if __name__ == "__main__":
    num_clients = 8
    P_MAX = 1.0

    key = jax.random.PRNGKey(0)
    k1, k2, k3, k4 = jax.random.split(key, 4)

    # --- Small batch: single-block (no-grid) path -------------------------
    B1 = 4
    mult1 = jax.random.uniform(
        k1, (B1, num_clients + 1), jnp.float32, minval=0.1, maxval=2.0)
    chan1 = jax.random.uniform(
        k2, (B1, num_clients), jnp.float32, minval=0.1, maxval=2.0)

    out1 = jax.block_until_ready(
        structure_map(mult1, chan1, num_clients=num_clients, p_max=P_MAX))
    ref1 = structure_map_ref(mult1, chan1, num_clients=num_clients, p_max=P_MAX)
    assert out1.shape == (B1, num_clients + 1)
    assert jnp.allclose(out1, ref1, rtol=1e-5, atol=1e-6)

    # --- Larger batch: tiled, gridded path with a ragged last block -------
    B2 = 300   # 300 = 2*128 + 44 -> exercises the clipped final tile
    mult2 = jax.random.uniform(
        k3, (B2, num_clients + 1), jnp.float32, minval=0.1, maxval=2.0)
    chan2 = jax.random.uniform(
        k4, (B2, num_clients), jnp.float32, minval=0.1, maxval=2.0)

    out2 = jax.block_until_ready(
        structure_map(mult2, chan2, num_clients=num_clients, p_max=P_MAX,
                      block_b=128))
    ref2 = structure_map_ref(mult2, chan2, num_clients=num_clients, p_max=P_MAX)
    assert out2.shape == (B2, num_clients + 1)
    assert jnp.allclose(out2, ref2, rtol=1e-5, atol=1e-6)

    # --- Default auto-tiling sanity check (single VMEM-sized block) -------
    out3 = jax.block_until_ready(
        structure_map(mult2, chan2, num_clients=num_clients, p_max=P_MAX))
    assert jnp.allclose(out3, ref2, rtol=1e-5, atol=1e-6)

    print("KERNEL_OK")
</pallas_src>

<mosaic_0001>
module attributes {stable_mosaic.version = 11 : i64} {
  func.func @_structure_map_kernel(%arg0: memref<8x4xf32, #tpu.memory_space<vmem>>, %arg1: memref<8x4xf32, #tpu.memory_space<vmem>>, %arg2: memref<1x4xf32, #tpu.memory_space<vmem>>, %arg3: memref<9x4xf32, #tpu.memory_space<vmem>>) attributes {dimension_semantics = [], scalar_prefetch = 0 : i64, scratch_operands = 0 : i64, tpu.core_type = #tpu.core_type<tc>} {
    %c0 = arith.constant 0 : index
    %c0_0 = arith.constant 0 : index
    %0 = vector.load %arg0[%c0, %c0_0] : memref<8x4xf32, #tpu.memory_space<vmem>>, vector<8x4xf32>
    %c0_1 = arith.constant 0 : index
    %c0_2 = arith.constant 0 : index
    %1 = vector.load %arg1[%c0_1, %c0_2] : memref<8x4xf32, #tpu.memory_space<vmem>>, vector<8x4xf32>
    %c0_3 = arith.constant 0 : index
    %c0_4 = arith.constant 0 : index
    %2 = vector.load %arg2[%c0_3, %c0_4] : memref<1x4xf32, #tpu.memory_space<vmem>>, vector<1x4xf32>
    %3 = vector.broadcast %2 : vector<1x4xf32> to vector<8x4xf32>
    %4 = arith.mulf %3, %0 : vector<8x4xf32>
    %5 = vector.broadcast %2 : vector<1x4xf32> to vector<8x4xf32>
    %6 = arith.mulf %1, %5 : vector<8x4xf32>
    %7 = arith.addf %0, %6 : vector<8x4xf32>
    %8 = arith.mulf %7, %7 : vector<8x4xf32>
    %9 = arith.divf %4, %8 : vector<8x4xf32>
    %cst = arith.constant 1.000000e+00 : f32
    %10 = vector.broadcast %cst : f32 to vector<8x4xf32>
    %11 = arith.minimumf %9, %10 : vector<8x4xf32>
    %c0_5 = arith.constant 0 : index
    %c0_6 = arith.constant 0 : index
    %12 = vector.load %arg3[%c0_5, %c0_6] : memref<9x4xf32, #tpu.memory_space<vmem>>, vector<8x4xf32>
    tpu.vector_store %arg3[%c0_5, %c0_6], %11 {strides = array<i32>} : memref<9x4xf32, #tpu.memory_space<vmem>>, vector<8x4xf32>,
    %c8 = arith.constant 8 : index
    %c0_7 = arith.constant 0 : index
    %13 = vector.load %arg3[%c8, %c0_7] : memref<9x4xf32, #tpu.memory_space<vmem>>, vector<1x4xf32>
    tpu.vector_store %arg3[%c8, %c0_7], %2 {strides = array<i32>} : memref<9x4xf32, #tpu.memory_space<vmem>>, vector<1x4xf32>,
    return
  }
}

</mosaic_0001>

<llo_original>
// kernel: tpu_custom_call.1
$region0: #{tpu_custom_call.1}
  #allocation0 [shape = 'u32[]', space=smem, size = 0x4, offset = 0x4, fixed_abs, tag = 'smem constant byte address 0x4 - core index']
  #allocation1 [shape = 'u32[144,128]{1,0:T(1,128)}', space=vmem, size = 0x12000, scoped, tag = 'internal scratch']
  %s0 = inlined_call_operand.vmem [shape: f32[8,4], index: 0, kind: input, shape index: {}]
  %s1 = inlined_call_operand.vmem [shape: f32[8,4], index: 1, kind: input, shape index: {}]
  %s2 = inlined_call_operand.vmem [shape: f32[1,4], index: 2, kind: input, shape index: {}]
  %s3 = inlined_call_operand.vmem [shape: f32[9,4], index: 3, kind: output, shape index: {}]
  %s4 = sld [smem:[#allocation0]]
  $region22: #{tpu_custom_call.1} parent=0
    _
  %s6 = ssub.s32 1, %s4
  %s7 = scalar_select 0, %s6, %s4
  // Predicated region
  $region2: #{tpu_custom_call.1} parent=0 // pred_check
    _
  $region3: #{tpu_custom_call.1} parent=0 // pred_check_branch
    %9 = sbr.rel (0) target = $region5
  $region4: #{tpu_custom_call.1} parent=0 // pred_region
    _
  $region5: #{tpu_custom_call.1} parent=0 // pred_fallthru
    _
  // Predicated region
  $region6: #{tpu_custom_call.1} parent=0 // pred_check
    _
  $region7: #{tpu_custom_call.1} parent=0 // pred_check_branch
    %11 = sbr.rel (0) target = $region9
  $region8: #{tpu_custom_call.1} parent=0 // pred_region
    _
  $region9: #{tpu_custom_call.1} parent=0 // pred_fallthru
    _
  // Predicated region
  $region10: #{tpu_custom_call.1} parent=0 // pred_check
    _
  $region11: #{tpu_custom_call.1} parent=0 // pred_check_branch
    %13 = sbr.rel (0) target = $region13
  $region12: #{tpu_custom_call.1} parent=0 // pred_region
    _
  $region13: #{tpu_custom_call.1} parent=0 // pred_fallthru
    _
  %v14 = vld [vmem:[%s0] sm:$0xff]
  %v15 = vld [vmem:[%s1] sm:$0xff]
  %v16 = vld [vmem:[%s2] sm:$0x1]
  %v18 = vlaneseq
  %v19 = vshrl.u32 %v18, 7
  %v20 = vsub.s32 0, %v19
  %v21 = vrot.slane %v16, %v20
  %v23 = vmul.f32 %v21, %v14
  %v24 = vmul.f32 %v15, %v21
  %v25 = vadd.f32 %v14, %v24
  %v26 = vmul.f32 %v25, %v25
  %v27 = vrcp.pop %v26
  %v28 = vmul.f32 %v23, %v27
  %v29 = vmin.f32 %v28, 1.0
  %vm30 = vcmask 31744
  %31 = vst.msk [vmem:[%s3] sm:$0xff] %vm30, %v29
  %vm32 = vcmask 24576
  %33 = vst.msk [vmem:[%s3 + $0x8] sm:$0x1] %vm32, %v16
  // Predicated region
  $region14: #{tpu_custom_call.1} parent=0 // pred_check
    _
  $region15: #{tpu_custom_call.1} parent=0 // pred_check_branch
    %35 = sbr.rel (0) target = $region17
  $region16: #{tpu_custom_call.1} parent=0 // pred_region
    _
  $region17: #{tpu_custom_call.1} parent=0 // pred_fallthru
    _
  // Predicated region
  $region18: #{tpu_custom_call.1} parent=0 // pred_check
    _
  $region19: #{tpu_custom_call.1} parent=0 // pred_check_branch
    %37 = sbr.rel (0) target = $region21
  $region20: #{tpu_custom_call.1} parent=0 // pred_region
    _
  $region21: #{tpu_custom_call.1} parent=0 // pred_fallthru
    _

</llo_original>
